<compile_context>
chip_gen: v7x
topology: tpu7x:2x2x1
jax: 0.10.0
libtpu: 0.0.40
codegen_flags: <defaults>
</compile_context>

<pallas_src>
import jax
import jax.numpy as jnp
from jax import lax
from jax.experimental import pallas as pl
from jax.experimental.pallas import tpu as pltpu


def attention_head_kernel(x_ref, wqkv_ref, bqkv_ref, mask_ref, o_ref):
    d_out = wqkv_ref.shape[0] // 3

    x = x_ref[0]                                             # (S, D_in), native dtype

    # Fused Q/K/V projection: contract last dim of x with last dim of W_qkv
    # (W stays in its (3*D_out, D_in) layout; the MXU absorbs the transpose).
    qkv = lax.dot_general(x, wqkv_ref[...],
                          (((1,), (1,)), ((), ())),
                          preferred_element_type=jnp.float32)
    qkv = (qkv + bqkv_ref[...]).astype(x.dtype)              # (S, 3*D_out)

    q = qkv[:, :d_out]                 # 1/sqrt(S) already folded into Wq / bq
    k = qkv[:, d_out:2 * d_out]
    v = qkv[:, 2 * d_out:]

    # scores = (q / sqrt(S)) @ k^T, f32 accumulation on the MXU (NT matmul).
    scores = lax.dot_general(q, k, (((1,), (1,)), ((), ())),
                             preferred_element_type=jnp.float32)   # (S, S)

    # Additive mask (0 keep / -1e9 masked); block is (1, 1, S) -> (1, S) broadcast.
    scores = scores + mask_ref[0]

    # Softmax over keys in f32; reciprocal on the (otherwise idle) EUP slot.
    m = jnp.max(scores, axis=-1, keepdims=True)
    e = jnp.exp(scores - m)
    attn = e * pl.reciprocal(jnp.sum(e, axis=-1, keepdims=True), approx=True)

    out = jnp.dot(attn.astype(v.dtype), v,
                  preferred_element_type=jnp.float32)        # (S, D_out)
    o_ref[0] = out.astype(o_ref.dtype)


def attention_head(x, wq, bq, wk, bk, wv, bv, attention_mask):
    """x: (B, S, dim_inp); w*: (dim_out, dim_inp) (PyTorch layout); b*: (dim_out,);
    attention_mask: (B, S) (1 = keep, 0 = mask). Returns (B, S, dim_out)."""
    B, S, D_in = x.shape
    D_out = wq.shape[0]

    # PyTorch: scale = query.size(1) ** 0.5 == sqrt(seq_len) (non-standard but
    # matches the module). Fold 1/scale into the Q projection.
    inv_scale = 1.0 / (float(S) ** 0.5)
    w_qkv = jnp.concatenate([wq * inv_scale, wk, wv], axis=0).astype(x.dtype)   # (3*D_out, D_in)
    b_qkv = jnp.concatenate([bq * inv_scale, bk, bv]).reshape(1, 3 * D_out).astype(jnp.float32)

    # Additive f32 mask: 0 keep / -1e9 masked, shape (B, 1, S). Matches
    # masked_fill(-1e9) numerically for any row with >=1 unmasked key.
    mask_add = jnp.where(attention_mask.reshape(B, 1, S) == 0,
                         jnp.float32(-1.0e9), jnp.float32(0.0))

    # Whole-array VMEM residency (constant across the batch grid): no per-step
    # DMA and no double-buffering of the fused weights/bias.
    vmem_full = pl.BlockSpec(memory_space=pltpu.MemorySpace.VMEM)

    # TODO(synk): output last dim (=dim_out) < 128 forces masked partial stores;
    # lane-dense packing would require changing the module's output layout.
    return pl.pallas_call(
        attention_head_kernel,
        out_shape=jax.ShapeDtypeStruct((B, S, D_out), x.dtype),
        grid_spec=pltpu.PrefetchScalarGridSpec(
            num_scalar_prefetch=0,
            grid=(B,),
            in_specs=[
                pl.BlockSpec((1, S, D_in), lambda b: (b, 0, 0)),   # x, per batch
                vmem_full,                                         # fused W_qkv
                vmem_full,                                         # fused b_qkv
                pl.BlockSpec((1, 1, S), lambda b: (b, 0, 0)),      # additive mask
            ],
            out_specs=pl.BlockSpec((1, S, D_out), lambda b: (b, 0, 0)),
        ),
        compiler_params=pltpu.CompilerParams(
            dimension_semantics=("parallel",),          # feeds v7x's 2 TCs when B>=2
            vmem_limit_bytes=48 * 1024 * 1024,          # > default scoped limit, < v7x physical
        ),
    )(x, w_qkv, b_qkv, mask_add)


def attention_head_ref(x, wq, bq, wk, bk, wv, bv, attention_mask):
    """Pure-JAX reference mirroring the PyTorch forward."""
    q = jnp.einsum("bsd,od->bso", x, wq) + bq
    k = jnp.einsum("bsd,od->bso", x, wk) + bk
    v = jnp.einsum("bsd,od->bso", x, wv) + bv
    scale = q.shape[1] ** 0.5
    scores = jnp.einsum("bqo,bko->bqk", q, k) / scale
    mask = attention_mask[:, None, :]
    scores = jnp.where(mask == 0, -1.0e9, scores)
    attn = jax.nn.softmax(scores, axis=-1)
    return jnp.einsum("bqk,bko->bqo", attn, v)


if __name__ == "__main__":
    B, S, DIM_INP, DIM_OUT = 2, 8, 32, 32

    key = jax.random.PRNGKey(0)
    kx, kq, kbq, kk, kbk, kv, kbv = jax.random.split(key, 7)

    x = jax.random.normal(kx, (B, S, DIM_INP), dtype=jnp.float32)
    wq = jax.random.normal(kq, (DIM_OUT, DIM_INP), dtype=jnp.float32) * 0.05
    bq = jax.random.normal(kbq, (DIM_OUT,), dtype=jnp.float32) * 0.05
    wk = jax.random.normal(kk, (DIM_OUT, DIM_INP), dtype=jnp.float32) * 0.05
    bk = jax.random.normal(kbk, (DIM_OUT,), dtype=jnp.float32) * 0.05
    wv = jax.random.normal(kv, (DIM_OUT, DIM_INP), dtype=jnp.float32) * 0.05
    bv = jax.random.normal(kbv, (DIM_OUT,), dtype=jnp.float32) * 0.05

    # attention mask: last two positions of batch 1 are padding
    attention_mask = jnp.ones((B, S), dtype=jnp.int32)
    attention_mask = attention_mask.at[1, -2:].set(0)

    out = attention_head(x, wq, bq, wk, bk, wv, bv, attention_mask)
    out = jax.block_until_ready(out)

    ref = attention_head_ref(x, wq, bq, wk, bk, wv, bv, attention_mask)
    assert out.shape == (B, S, DIM_OUT)
    # Tolerance accounts for the EUP approximate reciprocal in the softmax.
    assert jnp.allclose(out, ref, atol=1e-2, rtol=1e-2), \
        f"max abs diff {jnp.max(jnp.abs(out - ref))}"

    print("KERNEL_OK")
</pallas_src>

<mosaic_0001>
module attributes {stable_mosaic.version = 11 : i64} {
  func.func @attention_head_kernel(%arg0: i32, %arg1: memref<1x8x32xf32, #tpu.memory_space<vmem>>, %arg2: memref<96x32xf32, #tpu.memory_space<vmem>>, %arg3: memref<1x96xf32, #tpu.memory_space<vmem>>, %arg4: memref<1x1x8xf32, #tpu.memory_space<vmem>>, %arg5: memref<1x8x32xf32, #tpu.memory_space<vmem>>) attributes {dimension_semantics = [#tpu.dimension_semantics<parallel>], iteration_bounds = array<i64: 2>, scalar_prefetch = 0 : i64, scratch_operands = 0 : i64, tpu.core_type = #tpu.core_type<tc>, window_params = [{transform_indices = @transform_0, window_bounds = array<i64: 1, 8, 32>}, {pipeline_mode = #tpu.pipeline_mode<synchronous>, transform_indices = @transform_1, window_bounds = array<i64: 96, 32>}, {pipeline_mode = #tpu.pipeline_mode<synchronous>, transform_indices = @transform_2, window_bounds = array<i64: 1, 96>}, {transform_indices = @transform_3, window_bounds = array<i64: 1, 1, 8>}, {transform_indices = @transform_4, window_bounds = array<i64: 1, 8, 32>}]} {
    %c0 = arith.constant 0 : index
    %c0_0 = arith.constant 0 : index
    %c0_1 = arith.constant 0 : index
    %0 = vector.load %arg1[%c0, %c0_0, %c0_1] : memref<1x8x32xf32, #tpu.memory_space<vmem>>, vector<1x8x32xf32>
    %1 = vector.shape_cast %0 : vector<1x8x32xf32> to vector<8x32xf32>
    %c0_2 = arith.constant 0 : index
    %c0_3 = arith.constant 0 : index
    %2 = vector.load %arg2[%c0_2, %c0_3] : memref<96x32xf32, #tpu.memory_space<vmem>>, vector<96x32xf32>
    %cst = arith.constant dense<0.000000e+00> : vector<8x96xf32>
    %3 = tpu.matmul %1, %2, %cst {dimension_numbers = #tpu.dot_dimension_numbers<[1], [1], [0], [0], [0, 0, 1, 0], [], []>} : vector<8x32xf32>, vector<96x32xf32>, vector<8x96xf32> -> vector<8x96xf32>
    %c0_4 = arith.constant 0 : index
    %c0_5 = arith.constant 0 : index
    %4 = vector.load %arg3[%c0_4, %c0_5] : memref<1x96xf32, #tpu.memory_space<vmem>>, vector<1x96xf32>
    %5 = vector.broadcast %4 : vector<1x96xf32> to vector<8x96xf32>
    %6 = arith.addf %3, %5 : vector<8x96xf32>
    %7 = vector.extract_strided_slice %6 {offsets = [0, 0], sizes = [8, 32], strides = [1, 1]} : vector<8x96xf32> to vector<8x32xf32>
    %8 = vector.extract_strided_slice %6 {offsets = [0, 32], sizes = [8, 32], strides = [1, 1]} : vector<8x96xf32> to vector<8x32xf32>
    %9 = vector.extract_strided_slice %6 {offsets = [0, 64], sizes = [8, 32], strides = [1, 1]} : vector<8x96xf32> to vector<8x32xf32>
    %cst_6 = arith.constant dense<0.000000e+00> : vector<8x8xf32>
    %10 = tpu.matmul %7, %8, %cst_6 {dimension_numbers = #tpu.dot_dimension_numbers<[1], [1], [0], [0], [0, 0, 1, 0], [], []>} : vector<8x32xf32>, vector<8x32xf32>, vector<8x8xf32> -> vector<8x8xf32>
    %c0_7 = arith.constant 0 : index
    %c0_8 = arith.constant 0 : index
    %c0_9 = arith.constant 0 : index
    %11 = vector.load %arg4[%c0_7, %c0_8, %c0_9] : memref<1x1x8xf32, #tpu.memory_space<vmem>>, vector<1x1x8xf32>
    %12 = vector.shape_cast %11 : vector<1x1x8xf32> to vector<1x8xf32>
    %13 = vector.broadcast %12 : vector<1x8xf32> to vector<8x8xf32>
    %14 = arith.addf %10, %13 : vector<8x8xf32>
    %cst_10 = arith.constant dense<0xFF800000> : vector<8xf32>
    %15 = vector.multi_reduction <maximumf>, %14, %cst_10 [1] : vector<8x8xf32> to vector<8xf32>
    %16 = vector.shape_cast %15 : vector<8xf32> to vector<8x1xf32>
    %17 = vector.broadcast %16 : vector<8x1xf32> to vector<8x8xf32>
    %18 = arith.subf %14, %17 : vector<8x8xf32>
    %19 = math.exp %18 : vector<8x8xf32>
    %cst_11 = arith.constant dense<0.000000e+00> : vector<8xf32>
    %20 = vector.multi_reduction <add>, %19, %cst_11 [1] : vector<8x8xf32> to vector<8xf32>
    %21 = vector.shape_cast %20 : vector<8xf32> to vector<8x1xf32>
    %22 = tpu.reciprocal %21 {approx = true} : vector<8x1xf32> -> vector<8x1xf32>
    %23 = vector.broadcast %22 : vector<8x1xf32> to vector<8x8xf32>
    %24 = arith.mulf %19, %23 : vector<8x8xf32>
    %cst_12 = arith.constant dense<0.000000e+00> : vector<8x32xf32>
    %25 = tpu.matmul %24, %9, %cst_12 {dimension_numbers = #tpu.dot_dimension_numbers<[1], [0], [0], [1], [0, 0, 1, 1], [], []>} : vector<8x8xf32>, vector<8x32xf32>, vector<8x32xf32> -> vector<8x32xf32>
    %c0_13 = arith.constant 0 : index
    %c0_14 = arith.constant 0 : index
    %c0_15 = arith.constant 0 : index
    %26 = vector.load %arg5[%c0_13, %c0_14, %c0_15] : memref<1x8x32xf32, #tpu.memory_space<vmem>>, vector<1x8x32xf32>
    %27 = vector.shape_cast %26 : vector<1x8x32xf32> to vector<8x32xf32>
    %28 = vector.shape_cast %25 : vector<8x32xf32> to vector<1x8x32xf32>
    tpu.vector_store %arg5[%c0_13, %c0_14, %c0_15], %28 {strides = array<i32>} : memref<1x8x32xf32, #tpu.memory_space<vmem>>, vector<1x8x32xf32>,
    return
  }
  func.func @transform_0(%arg0: i32) -> (i32, i32, i32) {
    %c0_i32 = arith.constant 0 : i32
    %c0_i32_0 = arith.constant 0 : i32
    %c0_i32_1 = arith.constant 0 : i32
    return %arg0, %c0_i32, %c0_i32_0 : i32, i32, i32
  }
  func.func @transform_1(%arg0: i32) -> (i32, i32) {
    %c0_i32 = arith.constant 0 : i32
    %c0_i32_0 = arith.constant 0 : i32
    %c0_i32_1 = arith.constant 0 : i32
    return %c0_i32, %c0_i32_0 : i32, i32
  }
  func.func @transform_2(%arg0: i32) -> (i32, i32) {
    %c0_i32 = arith.constant 0 : i32
    %c0_i32_0 = arith.constant 0 : i32
    %c0_i32_1 = arith.constant 0 : i32
    return %c0_i32, %c0_i32_0 : i32, i32
  }
  func.func @transform_3(%arg0: i32) -> (i32, i32, i32) {
    %c0_i32 = arith.constant 0 : i32
    %c0_i32_0 = arith.constant 0 : i32
    %c0_i32_1 = arith.constant 0 : i32
    return %arg0, %c0_i32, %c0_i32_0 : i32, i32, i32
  }
  func.func @transform_4(%arg0: i32) -> (i32, i32, i32) {
    %c0_i32 = arith.constant 0 : i32
    %c0_i32_0 = arith.constant 0 : i32
    %c0_i32_1 = arith.constant 0 : i32
    return %arg0, %c0_i32, %c0_i32_0 : i32, i32, i32
  }
}

</mosaic_0001>

<llo_original>
// kernel: tpu_custom_call.1
$region0: #{tpu_custom_call.1}
  #allocation0 [shape = 'u32[]', space=smem, size = 0x4, offset = 0x4, fixed_abs, tag = 'smem constant byte address 0x4 - core index']
  #allocation1 [shape = 'u32[144,128]{1,0:T(1,128)}', space=vmem, size = 0x12000, scoped, tag = 'internal scratch']
  %s0 = inlined_call_operand.vmem [shape: f32[2,8,32], index: 0, kind: input, shape index: {}]
  %s1 = inlined_call_operand.vmem [shape: f32[96,32], index: 1, kind: input, shape index: {}]
  %s2 = inlined_call_operand.vmem [shape: f32[1,96], index: 2, kind: input, shape index: {}]
  %s3 = inlined_call_operand.vmem [shape: f32[2,1,8], index: 3, kind: input, shape index: {}]
  %s4 = inlined_call_operand.hbm [shape: f32[2,8,32], index: 4, kind: output, shape index: {}]
  %s5 = sld [smem:[#allocation0]]
  $region49: #{tpu_custom_call.1} parent=0
    _
  %s7 = ssub.s32 1, %s5
  %s8 = scalar_select 0, %s7, %s5
  $region1: #{tpu_custom_call.1} parent=0
    #allocation2 [shape = 'u8[8192]{0}', space=vmem, size = 0x2000, scoped, tag = 'output window, operand 0']
    #allocation3 [shape = 's32[2]{0}', space=sflag, size = 0x8, scoped, tag = 'scoped memory for tpu_custom_call.1']
    %9 = vsyncpa [#allocation3], 0
    %s10 = scalar_lea.sflag [#allocation3], 1
    %11 = vsyncpa %s10, 0
    loop: start=0, step=1, limit=4
    $region2: #{tpu_custom_call.1} parent=1 // loop_pre_header
      _
    $region3: #{tpu_custom_call.1} parent=1 // loop_header
      %s13 = sphi 0, %s17
      %p14 = scmp.ge.s32.totalorder %s13, 4
      %s23 = sphi 0, %s25
      %s26 = sphi 0, %s23
      %s27 = sphi 0, %s26
      %s43 = sphi 0, %s27
      %s47 = sphi 0, %s47
      %s49 = sphi 0, %s47
      %s50 = sphi 0, %s49
      %s64 = sphi 0, %s50
      %s68 = sphi 0, %s68
      %s70 = sphi 0, %s68
      %s71 = sphi 0, %s70
      %s85 = sphi 0, %s71
      %s91 = sphi 0, %s93
      %s94 = sphi 0, %s91
      %s95 = sphi 0, %s94
      %s111 = sphi 0, %s95
      %s117 = sphi 0, %s119
      %s120 = sphi 0, %s117
      %s121 = sphi 0, %s120
      %s137 = sphi 0, %s121
    $region4: #{tpu_custom_call.1} parent=1 // loop_header_branch
      %16 = sbr.rel (%p14) target = $region8
    $region5: #{tpu_custom_call.1} parent=1 // loop_body
      %s18 = ssub.s32 %s13, 1
      %s19 = ssub.s32 %s13, 2
      %s20 = sadd.s32 %s13, 1
      %s21 = ssub.s32 %s13, %s20
      %p22 = scmp.eq.s32.totalorder %s21, 0
      %s24 = sadd.s32 %s23, 1
      %s25 = scalar_select %p22, %s23, %s24
      %p28 = pneg %p22
      %p29 = scmp.eq.s32.totalorder %s13, 1
      %p30 = por %p28, %p29
      %p31 = scmp.ne.s32.totalorder %s23, %s26
      %p32 = scmp.eq.s32.totalorder %s13, 0
      %p33 = por %p31, %p32
      %p34 = scmp.ne.s32.totalorder %s23, %s26
      %p35 = scmp.eq.s32.totalorder %s18, 1
      %p36 = por %p34, %p35
      %p37 = scmp.ne.s32.totalorder %s26, %s27
      %p38 = scmp.eq.s32.totalorder %s18, 0
      %p39 = por %p37, %p38
      %p40 = scmp.ne.s32.totalorder %s26, %s27
      %p41 = scmp.eq.s32.totalorder %s19, 1
      %p42 = por %p40, %p41
      %p44 = scmp.ne.s32.totalorder %s27, %s43
      %p45 = scmp.eq.s32.totalorder %s19, 0
      %p46 = por %p44, %p45
      %s48 = sadd.s32 %s47, 1
      %p51 = scmp.eq.s32.totalorder %s13, 1
      %p52 = scmp.ne.s32.totalorder %s47, %s49
      %p53 = scmp.eq.s32.totalorder %s13, 0
      %p54 = por %p52, %p53
      %p55 = scmp.ne.s32.totalorder %s47, %s49
      %p56 = scmp.eq.s32.totalorder %s18, 1
      %p57 = por %p55, %p56
      %p58 = scmp.ne.s32.totalorder %s49, %s50
      %p59 = scmp.eq.s32.totalorder %s18, 0
      %p60 = por %p58, %p59
      %p61 = scmp.ne.s32.totalorder %s49, %s50
      %p62 = scmp.eq.s32.totalorder %s19, 1
      %p63 = por %p61, %p62
      %p65 = scmp.ne.s32.totalorder %s50, %s64
      %p66 = scmp.eq.s32.totalorder %s19, 0
      %p67 = por %p65, %p66
      %s69 = sadd.s32 %s68, 1
      %p72 = scmp.eq.s32.totalorder %s13, 1
      %p73 = scmp.ne.s32.totalorder %s68, %s70
      %p74 = scmp.eq.s32.totalorder %s13, 0
      %p75 = por %p73, %p74
      %p76 = scmp.ne.s32.totalorder %s68, %s70
      %p77 = scmp.eq.s32.totalorder %s18, 1
      %p78 = por %p76, %p77
      %p79 = scmp.ne.s32.totalorder %s70, %s71
      %p80 = scmp.eq.s32.totalorder %s18, 0
      %p81 = por %p79, %p80
      %p82 = scmp.ne.s32.totalorder %s70, %s71
      %p83 = scmp.eq.s32.totalorder %s19, 1
      %p84 = por %p82, %p83
      %p86 = scmp.ne.s32.totalorder %s71, %s85
      %p87 = scmp.eq.s32.totalorder %s19, 0
      %p88 = por %p86, %p87
      %s89 = ssub.s32 %s13, %s20
      %p90 = scmp.eq.s32.totalorder %s89, 0
      %s92 = sadd.s32 %s91, 1
      %s93 = scalar_select %p90, %s91, %s92
      %p96 = pneg %p90
      %p97 = scmp.eq.s32.totalorder %s13, 1
      %p98 = por %p96, %p97
      %p99 = scmp.ne.s32.totalorder %s91, %s94
      %p100 = scmp.eq.s32.totalorder %s13, 0
      %p101 = por %p99, %p100
      %p102 = scmp.ne.s32.totalorder %s91, %s94
      %p103 = scmp.eq.s32.totalorder %s18, 1
      %p104 = por %p102, %p103
      %p105 = scmp.ne.s32.totalorder %s94, %s95
      %p106 = scmp.eq.s32.totalorder %s18, 0
      %p107 = por %p105, %p106
      %p108 = scmp.ne.s32.totalorder %s94, %s95
      %p109 = scmp.eq.s32.totalorder %s19, 1
      %p110 = por %p108, %p109
      %p112 = scmp.ne.s32.totalorder %s95, %s111
      %p113 = scmp.eq.s32.totalorder %s19, 0
      %p114 = por %p112, %p113
      %s115 = ssub.s32 %s13, %s20
      %p116 = scmp.eq.s32.totalorder %s115, 0
      %s118 = sadd.s32 %s117, 1
      %s119 = scalar_select %p116, %s117, %s118
      %p122 = pneg %p116
      %p123 = scmp.eq.s32.totalorder %s13, 1
      %p124 = por %p122, %p123
      %p125 = scmp.ne.s32.totalorder %s117, %s120
      %p126 = scmp.eq.s32.totalorder %s13, 0
      %p127 = por %p125, %p126
      %p128 = scmp.ne.s32.totalorder %s117, %s120
      %p129 = scmp.eq.s32.totalorder %s18, 1
      %p130 = por %p128, %p129
      %p131 = scmp.ne.s32.totalorder %s120, %s121
      %p132 = scmp.eq.s32.totalorder %s18, 0
      %p133 = por %p131, %p132
      %p134 = scmp.ne.s32.totalorder %s120, %s121
      %p135 = scmp.eq.s32.totalorder %s19, 1
      %p136 = por %p134, %p135
      %p138 = scmp.ne.s32.totalorder %s121, %s137
      %p139 = scmp.eq.s32.totalorder %s19, 0
      %p140 = por %p138, %p139
      %p141 = scmp.le.s32.totalorder 1, %s13
      %p142 = scmp.lt.s32.totalorder %s13, 3
      %p143 = pnand %p141, %p142
      %p144 = pneg %p143
      // Predicated region
      $region9: #{tpu_custom_call.1} parent=5 // pred_check
        _
      $region10: #{tpu_custom_call.1} parent=5 // pred_check_branch
        %146 = sbr.rel (%p143) target = $region12
      $region11: #{tpu_custom_call.1} parent=5 // pred_region
        %s147 = ssub.s32 %s13, 1
        // Predicated region
        $region13: #{tpu_custom_call.1} parent=11 // pred_check
          %p148 = pneg %p60
        $region14: #{tpu_custom_call.1} parent=11 // pred_check_branch
          %150 = sbr.rel (%p148) target = $region16
        $region15: #{tpu_custom_call.1} parent=11 // pred_region
          _
        $region16: #{tpu_custom_call.1} parent=11 // pred_fallthru
          _
        // Predicated region
        $region17: #{tpu_custom_call.1} parent=11 // pred_check
          %p151 = pneg %p81
        $region18: #{tpu_custom_call.1} parent=11 // pred_check_branch
          %153 = sbr.rel (%p151) target = $region20
        $region19: #{tpu_custom_call.1} parent=11 // pred_region
          _
        $region20: #{tpu_custom_call.1} parent=11 // pred_fallthru
          _
      $region12: #{tpu_custom_call.1} parent=5 // pred_fallthru
        _
      %p154 = scmp.lt.s32.totalorder %s13, 2
      // Predicated region
      $region21: #{tpu_custom_call.1} parent=5 // pred_check
        %p155 = pneg %p154
      $region22: #{tpu_custom_call.1} parent=5 // pred_check_branch
        %157 = sbr.rel (%p155) target = $region24
      $region23: #{tpu_custom_call.1} parent=5 // pred_region
        // Predicated region
        $region25: #{tpu_custom_call.1} parent=23 // pred_check
          %p158 = pneg %p33
        $region26: #{tpu_custom_call.1} parent=23 // pred_check_branch
          %160 = sbr.rel (%p158) target = $region28
        $region27: #{tpu_custom_call.1} parent=23 // pred_region
          %p161 = scmp.lt.s32.totalorder %s13, 1
          %s162 = scalar_select %p161, %s13, 1
          %s163 = smul.addr %s162, 8
          %s164 = scalar_lea.vmem %s0, %s163
        $region28: #{tpu_custom_call.1} parent=23 // pred_fallthru
          _
        // Predicated region
        $region29: #{tpu_custom_call.1} parent=23 // pred_check
          %p165 = pneg %p101
        $region30: #{tpu_custom_call.1} parent=23 // pred_check_branch
          %167 = sbr.rel (%p165) target = $region32
        $region31: #{tpu_custom_call.1} parent=23 // pred_region
          %p168 = scmp.lt.s32.totalorder %s13, 1
          %s169 = scalar_select %p168, %s13, 1
          %s170 = scalar_lea.vmem %s3, %s169
        $region32: #{tpu_custom_call.1} parent=23 // pred_fallthru
          _
      $region24: #{tpu_custom_call.1} parent=5 // pred_fallthru
        _
      %p171 = scmp.le.s32.totalorder 1, %s13
      %p172 = scmp.lt.s32.totalorder %s13, 3
      %p173 = pnand %p171, %p172
      %p174 = pneg %p173
      // Predicated region
      $region33: #{tpu_custom_call.1} parent=5 // pred_check
        _
      $region34: #{tpu_custom_call.1} parent=5 // pred_check_branch
        %176 = sbr.rel (%p173) target = $region36
      $region35: #{tpu_custom_call.1} parent=5 // pred_region
        %s177 = ssub.s32 %s13, 1
        %p178 = scmp.lt.s32.totalorder %s18, 1
        %s179 = scalar_select %p178, %s18, 1
        %s180 = smul.addr %s179, 8
        %s181 = scalar_lea.vmem %s0, %s180
        %p182 = pneg %p39
        %p183 = pneg %p36
        %p184 = pneg %p60
        %p185 = pneg %p57
        %p186 = pneg %p81
        %p187 = pneg %p78
        %p188 = scmp.lt.s32.totalorder %s18, 1
        %s189 = scalar_select %p188, %s18, 1
        %s190 = scalar_lea.vmem %s3, %s189
        %p191 = pneg %p107
        %p192 = pneg %p104
        %p193 = pneg %p133
        %p194 = pneg %p130
        %s195 = sand.u32 %s120, 1
        %s196 = scalar_lea.sflag [#allocation3], %s195
        %s197 = sand.u32 %s120, 1
        %s198 = smul.addr %s197, 8
        %s199 = scalar_lea.vmem [#allocation2], %s198
        %p200 = scmp.lt.s32.totalorder %s18, 1
        %s201 = scalar_select %p200, %s18, 1
        %s202 = smul.addr %s201, 8
        %s203 = scalar_lea.vmem %s0, %s202
        %p204 = scmp.lt.s32.totalorder %s18, 1
        %s205 = scalar_select %p204, %s18, 1
        %s206 = scalar_lea.vmem %s3, %s205
        %v207 = vld [vmem:[%s203] sm:$0xff]
        %v208 = vld [vmem:[%s1] sm:$0xff]
        %v209 = vld [vmem:[%s1 + $0x8] sm:$0xff]
        %v210 = vld [vmem:[%s1 + $0x10] sm:$0xff]
        %v211 = vld [vmem:[%s1 + $0x18] sm:$0xff]
        %v212 = vld [vmem:[%s1 + $0x20] sm:$0xff]
        %v213 = vld [vmem:[%s1 + $0x28] sm:$0xff]
        %v214 = vld [vmem:[%s1 + $0x30] sm:$0xff]
        %v215 = vld [vmem:[%s1 + $0x38] sm:$0xff]
        %v216 = vld [vmem:[%s1 + $0x40] sm:$0xff]
        %v217 = vld [vmem:[%s1 + $0x48] sm:$0xff]
        %v218 = vld [vmem:[%s1 + $0x50] sm:$0xff]
        %v219 = vld [vmem:[%s1 + $0x58] sm:$0xff]
        %v220 = vld [vmem:[%s2] sm:$0x1]
        %v222 = vlaneseq
        %v223 = vshrl.u32 %v222, 7
        %v224 = vsub.s32 0, %v223
        %v225 = vrot.slane %v220, %v224
        %vm227 = vcmask 261120
        %v229 = vsel %vm227, %v207, 0
        %v232 = vsel %vm227, %v208, 0
        %v235 = vsel %vm227, %v209, 0
        %v238 = vsel %vm227, %v210, 0
        %v241 = vsel %vm227, %v211, 0
        %v244 = vsel %vm227, %v212, 0
        %v247 = vsel %vm227, %v213, 0
        %v250 = vsel %vm227, %v214, 0
        %v253 = vsel %vm227, %v215, 0
        %v256 = vsel %vm227, %v216, 0
        %v259 = vsel %vm227, %v217, 0
        %v262 = vsel %vm227, %v218, 0
        %v265 = vsel %vm227, %v219, 0
        %267 = vmatprep.subr.mxu0 0.0
        %268 = vmatpush1.xpose.msra.mxu0 %v232
        %269 = vmatprep.subr.mxu0 0.0
        %270 = vmatpush1.xpose.msra.mxu0 %v235
        %271 = vmatprep.subr.mxu0 0.0
        %272 = vmatpush1.xpose.msra.mxu0 %v238
        %273 = vmatprep.subr.mxu0 0.0
        %274 = vmatpush1.xpose.msra.mxu0 %v241
        %275 = vmatprep.subr.mxu0 0.0
        %276 = vmatpush1.xpose.msra.mxu0 %v244
        %277 = vmatprep.subr.mxu0 0.0
        %278 = vmatpush1.xpose.msra.mxu0 %v247
        %279 = vmatprep.subr.mxu0 0.0
        %280 = vmatpush1.xpose.msra.mxu0 %v250
        %281 = vmatprep.subr.mxu0 0.0
        %282 = vmatpush1.xpose.msra.mxu0 %v253
        %283 = vmatprep.subr.mxu0 0.0
        %284 = vmatpush1.xpose.msra.mxu0 %v256
        %285 = vmatprep.subr.mxu0 0.0
        %286 = vmatpush1.xpose.msra.mxu0 %v259
        %287 = vmatprep.subr.mxu0 0.0
        %288 = vmatpush1.xpose.msra.mxu0 %v262
        %289 = vmatprep.subr.mxu0 0.0
        %290 = vmatpush1.xpose.msra.mxu0 %v265
        %291 = vmatprep.subr.mxu0 0.0
        %292 = vmatpush1.xpose.msra.mxu0 0.0
        %293 = vmatprep.subr.mxu0 0.0
        %294 = vmatpush1.xpose.msra.mxu0 0.0
        %295 = vmatprep.subr.mxu0 0.0
        %296 = vmatpush1.xpose.msra.mxu0 0.0
        %297 = vmatprep.subr.mxu0 0.0
        %298 = vmatpush1.xpose.msra.mxu0 0.0
        %299 = vmatprep.subr.mxu0 0.0
        %300 = vmatpush1.xpose.msra.mxu0 0.0
        %301 = vmatprep.subr.mxu0 0.0
        %302 = vmatpush1.xpose.msra.mxu0 0.0
        %303 = vmatprep.subr.mxu0 0.0
        %304 = vmatpush1.xpose.msra.mxu0 0.0
        %305 = vmatprep.subr.mxu0 0.0
        %306 = vmatpush1.xpose.msra.mxu0 0.0
        %307 = vmatprep.subr.mxu0 0.0
        %308 = vmatpush1.xpose.msra.mxu0 0.0
        %309 = vmatprep.subr.mxu0 0.0
        %310 = vmatpush1.xpose.msra.mxu0 0.0
        %311 = vmatprep.subr.mxu0 0.0
        %312 = vmatpush1.xpose.msra.mxu0 0.0
        %313 = vmatprep.subr.mxu0 0.0
        %314 = vmatpush1.xpose.msra.mxu0 0.0
        %315 = vmatprep.subr.mxu0 0.0
        %316 = vmatpush1.xpose.msra.mxu0 0.0
        %317 = vmatprep.subr.mxu0 0.0
        %318 = vmatpush1.xpose.msra.mxu0 0.0
        %319 = vmatprep.subr.mxu0 0.0
        %320 = vmatpush1.xpose.msra.mxu0 0.0
        %321 = vmatprep.subr.mxu0 0.0
        %322 = vmatpush1.xpose.msra.mxu0 0.0
        %323 = vmatprep.subr.mxu0 0.0
        %324 = vmatpush1.xpose.msra.mxu0 0.0
        %325 = vmatprep.subr.mxu0 0.0
        %326 = vmatpush1.xpose.msra.mxu0 0.0
        %327 = vmatprep.subr.mxu0 0.0
        %328 = vmatpush1.xpose.msra.mxu0 0.0
        %329 = vmatprep.subr.mxu0 0.0
        %330 = vmatpush1.xpose.msra.mxu0 0.0
        %331 = vmatprep.mubr.f32.mxu0 0.0
        %332 = vmatmul.mubr.f32.gmra.mrb[0].mxu0 %v229
        %v333 = vpop.f32.mrb[0].mxu0
        %v334 = vadd.f32 %v225, %v333
        %v335 = vpop.f32.mrb[0].mxu0
        %336 = vdwg.mxu0
        %v337 = vld [vmem:[%s206] sm:$0x1]
        %v339 = vlaneseq
        %v340 = vshrl.u32 %v339, 7
        %v341 = vsub.s32 0, %v340
        %v342 = vrot.slane %v337, %v341
        %345 = vrot.lane.b32.xlu0 %v334, 96
        %v346 = vpop.permute.xlu0 %345
        %v347 = vsel %vm227, %v334, 0
        %v349 = vsel %vm227, %v346, 0
        %351 = vmatprep.subr.mxu0 0.0
        %352 = vmatpush1.xpose.msra.mxu0 %v349
        %353 = vmatprep.subr.mxu0 0.0
        %354 = vmatpush1.xpose.msra.mxu0 0.0
        %355 = vmatprep.subr.mxu0 0.0
        %356 = vmatpush1.xpose.msra.mxu0 0.0
        %357 = vmatprep.subr.mxu0 0.0
        %358 = vmatpush1.xpose.msra.mxu0 0.0
        %359 = vmatprep.subr.mxu0 0.0
        %360 = vmatpush1.xpose.msra.mxu0 0.0
        %361 = vmatprep.subr.mxu0 0.0
        %362 = vmatpush1.xpose.msra.mxu0 0.0
        %363 = vmatprep.subr.mxu0 0.0
        %364 = vmatpush1.xpose.msra.mxu0 0.0
        %365 = vmatprep.subr.mxu0 0.0
        %366 = vmatpush1.xpose.msra.mxu0 0.0
        %367 = vmatprep.subr.mxu0 0.0
        %368 = vmatpush1.xpose.msra.mxu0 0.0
        %369 = vmatprep.subr.mxu0 0.0
        %370 = vmatpush1.xpose.msra.mxu0 0.0
        %371 = vmatprep.subr.mxu0 0.0
        %372 = vmatpush1.xpose.msra.mxu0 0.0
        %373 = vmatprep.subr.mxu0 0.0
        %374 = vmatpush1.xpose.msra.mxu0 0.0
        %375 = vmatprep.subr.mxu0 0.0
        %376 = vmatpush1.xpose.msra.mxu0 0.0
        %377 = vmatprep.subr.mxu0 0.0
        %378 = vmatpush1.xpose.msra.mxu0 0.0
        %379 = vmatprep.subr.mxu0 0.0
        %380 = vmatpush1.xpose.msra.mxu0 0.0
        %381 = vmatprep.subr.mxu0 0.0
        %382 = vmatpush1.xpose.msra.mxu0 0.0
        %383 = vmatprep.subr.mxu0 0.0
        %384 = vmatpush1.xpose.msra.mxu0 0.0
        %385 = vmatprep.subr.mxu0 0.0
        %386 = vmatpush1.xpose.msra.mxu0 0.0
        %387 = vmatprep.subr.mxu0 0.0
        %388 = vmatpush1.xpose.msra.mxu0 0.0
        %389 = vmatprep.subr.mxu0 0.0
        %390 = vmatpush1.xpose.msra.mxu0 0.0
        %391 = vmatprep.subr.mxu0 0.0
        %392 = vmatpush1.xpose.msra.mxu0 0.0
        %393 = vmatprep.subr.mxu0 0.0
        %394 = vmatpush1.xpose.msra.mxu0 0.0
        %395 = vmatprep.subr.mxu0 0.0
        %396 = vmatpush1.xpose.msra.mxu0 0.0
        %397 = vmatprep.subr.mxu0 0.0
        %398 = vmatpush1.xpose.msra.mxu0 0.0
        %399 = vmatprep.subr.mxu0 0.0
        %400 = vmatpush1.xpose.msra.mxu0 0.0
        %401 = vmatprep.subr.mxu0 0.0
        %402 = vmatpush1.xpose.msra.mxu0 0.0
        %403 = vmatprep.subr.mxu0 0.0
        %404 = vmatpush1.xpose.msra.mxu0 0.0
        %405 = vmatprep.subr.mxu0 0.0
        %406 = vmatpush1.xpose.msra.mxu0 0.0
        %407 = vmatprep.subr.mxu0 0.0
        %408 = vmatpush1.xpose.msra.mxu0 0.0
        %409 = vmatprep.subr.mxu0 0.0
        %410 = vmatpush1.xpose.msra.mxu0 0.0
        %411 = vmatprep.subr.mxu0 0.0
        %412 = vmatpush1.xpose.msra.mxu0 0.0
        %413 = vmatprep.subr.mxu0 0.0
        %414 = vmatpush1.xpose.msra.mxu0 0.0
        %415 = vmatprep.mubr.f32.mxu0 0.0
        %416 = vmatmul.mubr.f32.gmra.mrb[0].mxu0 %v347
        %v417 = vpop.f32.mrb[0].mxu0
        %v418 = vadd.f32 %v342, %v417
        %v419 = vpop.f32.mrb[0].mxu0
        %420 = vdwg.mxu0
        %vm421 = vcmask 64512
        %v422 = vsel %vm421, %v418, -inf
        %423 = vmax.xlane.f32.xlu0 %v422
        %v424 = vpop.xlane.xlu0 %423
        %v425 = vsub.f32 %v418, %v424
        %v426 = vmul.f32 %v425, 1.442695
        %v427 = vpow.pop %v426
        %v428 = vsel %vm421, %v427, 0.0
        %429 = vadd.xlane.f32.xlu0 %v428
        %v430 = vpop.xlane.xlu0 %429
        %v431 = vrcp.pop %v430
        %v432 = vmul.f32 %v427, %v431
        %433 = vrot.lane.b32.xlu0 %v334, 64
        %v434 = vpop.permute.xlu0 %433
        %v437 = vsel %vm421, %v432, 0
        %439 = vmatprep.subr.mxu0 0.0
        %440 = vmatpush1.msra.mxu0 %v434
        %441 = vmatprep.subr.mxu0 0.0
        %442 = vmatpush1.msra.mxu0 0.0
        %443 = vmatprep.subr.mxu0 0.0
        %444 = vmatpush1.msra.mxu0 0.0
        %445 = vmatprep.subr.mxu0 0.0
        %446 = vmatpush1.msra.mxu0 0.0
        %447 = vmatprep.subr.mxu0 0.0
        %448 = vmatpush1.msra.mxu0 0.0
        %449 = vmatprep.subr.mxu0 0.0
        %450 = vmatpush1.msra.mxu0 0.0
        %451 = vmatprep.subr.mxu0 0.0
        %452 = vmatpush1.msra.mxu0 0.0
        %453 = vmatprep.subr.mxu0 0.0
        %454 = vmatpush1.msra.mxu0 0.0
        %455 = vmatprep.subr.mxu0 0.0
        %456 = vmatpush1.msra.mxu0 0.0
        %457 = vmatprep.subr.mxu0 0.0
        %458 = vmatpush1.msra.mxu0 0.0
        %459 = vmatprep.subr.mxu0 0.0
        %460 = vmatpush1.msra.mxu0 0.0
        %461 = vmatprep.subr.mxu0 0.0
        %462 = vmatpush1.msra.mxu0 0.0
        %463 = vmatprep.subr.mxu0 0.0
        %464 = vmatpush1.msra.mxu0 0.0
        %465 = vmatprep.subr.mxu0 0.0
        %466 = vmatpush1.msra.mxu0 0.0
        %467 = vmatprep.subr.mxu0 0.0
        %468 = vmatpush1.msra.mxu0 0.0
        %469 = vmatprep.subr.mxu0 0.0
        %470 = vmatpush1.msra.mxu0 0.0
        %471 = vmatprep.subr.mxu0 0.0
        %472 = vmatpush1.msra.mxu0 0.0
        %473 = vmatprep.subr.mxu0 0.0
        %474 = vmatpush1.msra.mxu0 0.0
        %475 = vmatprep.subr.mxu0 0.0
        %476 = vmatpush1.msra.mxu0 0.0
        %477 = vmatprep.subr.mxu0 0.0
        %478 = vmatpush1.msra.mxu0 0.0
        %479 = vmatprep.subr.mxu0 0.0
        %480 = vmatpush1.msra.mxu0 0.0
        %481 = vmatprep.subr.mxu0 0.0
        %482 = vmatpush1.msra.mxu0 0.0
        %483 = vmatprep.subr.mxu0 0.0
        %484 = vmatpush1.msra.mxu0 0.0
        %485 = vmatprep.subr.mxu0 0.0
        %486 = vmatpush1.msra.mxu0 0.0
        %487 = vmatprep.subr.mxu0 0.0
        %488 = vmatpush1.msra.mxu0 0.0
        %489 = vmatprep.subr.mxu0 0.0
        %490 = vmatpush1.msra.mxu0 0.0
        %491 = vmatprep.subr.mxu0 0.0
        %492 = vmatpush1.msra.mxu0 0.0
        %493 = vmatprep.subr.mxu0 0.0
        %494 = vmatpush1.msra.mxu0 0.0
        %495 = vmatprep.subr.mxu0 0.0
        %496 = vmatpush1.msra.mxu0 0.0
        %497 = vmatprep.subr.mxu0 0.0
        %498 = vmatpush1.msra.mxu0 0.0
        %499 = vmatprep.subr.mxu0 0.0
        %500 = vmatpush1.msra.mxu0 0.0
        %501 = vmatprep.subr.mxu0 0.0
        %502 = vmatpush1.msra.mxu0 0.0
        %503 = vmatprep.mubr.f32.mxu0 0.0
        %504 = vmatmul.mubr.f32.gmra.mrb[0].mxu0 %v437
        %v505 = vpop.f32.mrb[0].mxu0
        %v506 = vadd.f32 0.0, %v505
        %v507 = vpop.f32.mrb[0].mxu0
        %508 = vdwg.mxu0
        %509 = vst.msk [vmem:[%s199] sm:$0xff] %vm227, %v506
        %s510 = sand.u32 %s120, 1
        %s511 = scalar_lea.sflag [#allocation3], %s510
        %s512 = sand.u32 %s120, 1
        %s513 = smul.addr %s512, 8
        %s514 = scalar_lea.vmem [#allocation2], %s513
        // Predicated region
        $region37: #{tpu_custom_call.1} parent=35 // pred_check
          %p515 = pneg %p130
        $region38: #{tpu_custom_call.1} parent=35 // pred_check_branch
          %517 = sbr.rel (%p515) target = $region40
        $region39: #{tpu_custom_call.1} parent=35 // pred_region
          %s519 = ssub.s32 128, 128
          %520 = vsyncadd %s511, %s519
          %s521 = smul.addr %s18, 128
          %s522 = scalar_lea.hbm %s4, %s521
          %s524 = sshll.u32 %s514, 4
          %s525 = int_to_ptr.vmem [resolvable:$true] %s524
          %527 = dma.vmem_to_hbm [thread:$0]  %s525, 128, %s522, %s511
        $region40: #{tpu_custom_call.1} parent=35 // pred_fallthru
          _
      $region36: #{tpu_custom_call.1} parent=5 // pred_fallthru
        _
      %p528 = scmp.le.s32.totalorder 2, %s13
      // Predicated region
      $region41: #{tpu_custom_call.1} parent=5 // pred_check
        %p529 = pneg %p528
      $region42: #{tpu_custom_call.1} parent=5 // pred_check_branch
        %531 = sbr.rel (%p529) target = $region44
      $region43: #{tpu_custom_call.1} parent=5 // pred_region
        %s532 = ssub.s32 %s13, 2
        // Predicated region
        $region45: #{tpu_custom_call.1} parent=43 // pred_check
          %p533 = pneg %p136
        $region46: #{tpu_custom_call.1} parent=43 // pred_check_branch
          %535 = sbr.rel (%p533) target = $region48
        $region47: #{tpu_custom_call.1} parent=43 // pred_region
          %s536 = sand.u32 %s121, 1
          %s537 = scalar_lea.sflag [#allocation3], %s536
          %s538 = sand.u32 %s121, 1
          %s539 = smul.addr %s538, 8
          %s540 = scalar_lea.vmem [#allocation2], %s539
          %541 = dma.done %s537, 128
        $region48: #{tpu_custom_call.1} parent=43 // pred_fallthru
          _
      $region44: #{tpu_custom_call.1} parent=5 // pred_fallthru
        _
    $region6: #{tpu_custom_call.1} parent=1 // loop_footer
      %s17 = sadd.s32 1, %s13
    $region7: #{tpu_custom_call.1} parent=1 // loop_footer_branch
      %12 = sbr.rel target = $region3
    $region8: #{tpu_custom_call.1} parent=1 // loop_exit
      _
    %542 = vsyncpa [#allocation3], 1
    %s543 = scalar_lea.sflag [#allocation3], 1
    %544 = vsyncpa %s543, 1

</llo_original>
